<compile_context>
chip_gen: v6e
topology: v6e:2x2x1
jax: 0.10.0
libtpu: 0.0.40
codegen_flags: <defaults>
</compile_context>

<pallas_src>
import jax
import jax.numpy as jnp
from jax.experimental import pallas as pl
from jax.experimental.pallas import tpu as pltpu


# ---------------------------------------------------------------------------
# Pallas kernel: element-wise round-to-nearest-even (torch.round semantics)
# ---------------------------------------------------------------------------
def _round_kernel(x_ref, o_ref):
    # Load in native dtype, round in f32 registers (round-half-to-even, which
    # matches torch.round), cast back for the store.
    x = x_ref[...].astype(jnp.float32)
    o_ref[...] = jnp.round(x).astype(o_ref.dtype)


def _round_2d(x2d, tile_rows):
    """x2d: (rows, width) float array; width is a multiple of 128."""
    rows, width = x2d.shape
    return pl.pallas_call(
        _round_kernel,
        out_shape=jax.ShapeDtypeStruct((rows, width), x2d.dtype),
        grid=(pl.cdiv(rows, tile_rows),),
        in_specs=[pl.BlockSpec((tile_rows, width), lambda i: (i, 0))],
        out_specs=pl.BlockSpec((tile_rows, width), lambda i: (i, 0)),
        compiler_params=pltpu.CompilerParams(
            dimension_semantics=("parallel",),
        ),
    )(x2d)


_LANE = 128
_MAX_WIDTH = 1024        # lane-dense slab width (multiple of 128)
_MAX_TILE_ROWS = 512     # 512 x 1024 f32 = 2 MiB / block; fits all VMEM limits


@jax.jit
def _round_forward(x):
    """Round-to-nearest-even of an arbitrary-shaped float tensor via Pallas."""
    orig_shape = x.shape
    n = x.size
    if n == 0:
        return x

    # Lane-dense 2-D slab: last dim maps onto the 128-lane vreg axis.
    width = min(_MAX_WIDTH, ((n + _LANE - 1) // _LANE) * _LANE)
    rows = -(-n // width)          # ceil
    total = rows * width

    x_flat = jnp.ravel(x)
    if total != n:
        # Only the final partial row is padded (< width elements); fused by jit.
        x_flat = jnp.pad(x_flat, (0, total - n))
    x2d = x_flat.reshape(rows, width)

    # Block rows: either a multiple of 32 (legal tile for f32/bf16/f16) or the
    # full row extent when the slab is short.
    tile_rows = _MAX_TILE_ROWS if rows >= _MAX_TILE_ROWS else rows

    y2d = _round_2d(x2d, tile_rows)
    y = y2d.reshape(total)
    if total != n:
        y = y[:n]
    return y.reshape(orig_shape)


class ParametrizedGradEstimator:
    """JAX/Pallas analogue of ParametrizedGradEstimatorBase.

    The 'grad params' (e.g. a gradient-scaling factor) never participate in
    the forward pass; in PyTorch they only parametrize a custom backward
    rule.  They are kept here as plain attributes.
    """

    def __init__(self):
        self._trainable = False
        # Deterministic synthetic grad-estimator parameter (scalar buffer).
        self.grad_scaling = jnp.asarray(1.0, dtype=jnp.float32)

    def make_grad_params_trainable(self):
        # TODO(synk): only toggles trainability metadata; JAX has no in-place
        # Parameter/buffer promotion and forward values are unaffected.
        self._trainable = True

    def make_grad_params_tensor(self):
        self._trainable = False

    def __call__(self, x):
        # Base-class forward is abstract; this implements the shared forward
        # of its rounding subclasses (straight-through round).
        if not jnp.issubdtype(x.dtype, jnp.floating):
            # Rounding an integer tensor is the identity; avoid lossy casts.
            return x
        if x.dtype not in (jnp.float32, jnp.bfloat16, jnp.float16):
            # TODO(synk): exotic float dtypes fall back to plain XLA rounding.
            return jnp.round(x)
        return _round_forward(x)


if __name__ == "__main__":
    key = jax.random.PRNGKey(0)
    # NCHW input, small shapes: batch=2, channels=4, spatial=16x16
    x = jax.random.normal(key, (2, 4, 16, 16), dtype=jnp.float32) * 3.0

    module = ParametrizedGradEstimator()
    y = module(x)
    y = jax.block_until_ready(y)

    # sanity check against plain JAX reference
    ref = jnp.round(x)
    assert y.shape == x.shape and y.dtype == x.dtype
    assert bool(jnp.all(y == ref))

    print("KERNEL_OK")
</pallas_src>

<mosaic_0001>
module attributes {stable_mosaic.version = 11 : i64} {
  func.func @_round_kernel(%arg0: i32, %arg1: memref<2x1024xf32, #tpu.memory_space<vmem>>, %arg2: memref<2x1024xf32, #tpu.memory_space<vmem>>) attributes {dimension_semantics = [#tpu.dimension_semantics<parallel>], iteration_bounds = array<i64: 1>, scalar_prefetch = 0 : i64, scratch_operands = 0 : i64, tpu.core_type = #tpu.core_type<tc>, window_params = [{transform_indices = @transform_0, window_bounds = array<i64: 2, 1024>}, {transform_indices = @transform_1, window_bounds = array<i64: 2, 1024>}]} {
    %c0 = arith.constant 0 : index
    %c0_0 = arith.constant 0 : index
    %0 = vector.load %arg1[%c0, %c0_0] : memref<2x1024xf32, #tpu.memory_space<vmem>>, vector<2x1024xf32>
    %1 = math.roundeven %0 : vector<2x1024xf32>
    %c0_1 = arith.constant 0 : index
    %c0_2 = arith.constant 0 : index
    %2 = vector.load %arg2[%c0_1, %c0_2] : memref<2x1024xf32, #tpu.memory_space<vmem>>, vector<2x1024xf32>
    tpu.vector_store %arg2[%c0_1, %c0_2], %1 {strides = array<i32>} : memref<2x1024xf32, #tpu.memory_space<vmem>>, vector<2x1024xf32>,
    return
  }
  func.func @transform_0(%arg0: i32) -> (i32, i32) {
    %c0_i32 = arith.constant 0 : i32
    %c0_i32_0 = arith.constant 0 : i32
    return %arg0, %c0_i32 : i32, i32
  }
  func.func @transform_1(%arg0: i32) -> (i32, i32) {
    %c0_i32 = arith.constant 0 : i32
    %c0_i32_0 = arith.constant 0 : i32
    return %arg0, %c0_i32 : i32, i32
  }
}

</mosaic_0001>

<llo_original>
// kernel: _round_forward.1
$region0: #{_round_forward.1}
  #allocation0 [shape = 'u32[]', space=smem, size = 0x4, offset = 0x4, fixed_abs, tag = 'smem constant byte address 0x4 - core index']
  #allocation1 [shape = 'u32[144,128]{1,0:T(1,128)}', space=vmem, size = 0x12000, scoped, tag = 'internal scratch']
  %s0 = inlined_call_operand.vmem [shape: f32[2,1024], index: 0, kind: input, shape index: {}]
  %s1 = inlined_call_operand.vmem [shape: f32[2,1024], index: 1, kind: output, shape index: {}]
  %s2 = sld [smem:[#allocation0]]
  $region14: #{_round_forward.1} parent=0
    _
  %s4 = ssub.s32 1, %s2
  %s5 = scalar_select 0, %s4, %s2
  // Predicated region
  $region2: #{_round_forward.1} parent=0 // pred_check
    _
  $region3: #{_round_forward.1} parent=0 // pred_check_branch
    %7 = sbr.rel (0) target = $region5
  $region4: #{_round_forward.1} parent=0 // pred_region
    _
  $region5: #{_round_forward.1} parent=0 // pred_fallthru
    _
  %v8 = vld [vmem:[%s0] sm:$0xff]
  %v9 = vld [vmem:[%s0 + $0x8] sm:$0xff]
  %v10 = vround.ne.pseudo %v8
  %v11 = vround.ne.pseudo %v9
  %12 = vst [vmem:[%s1] sm:$0xff] %v10
  %13 = vst [vmem:[%s1 + $0x8] sm:$0xff] %v11
  // Predicated region
  $region6: #{_round_forward.1} parent=0 // pred_check
    _
  $region7: #{_round_forward.1} parent=0 // pred_check_branch
    %15 = sbr.rel (0) target = $region9
  $region8: #{_round_forward.1} parent=0 // pred_region
    _
  $region9: #{_round_forward.1} parent=0 // pred_fallthru
    _
  // Predicated region
  $region10: #{_round_forward.1} parent=0 // pred_check
    _
  $region11: #{_round_forward.1} parent=0 // pred_check_branch
    %17 = sbr.rel (0) target = $region13
  $region12: #{_round_forward.1} parent=0 // pred_region
    _
  $region13: #{_round_forward.1} parent=0 // pred_fallthru
    _

</llo_original>
